<compile_context>
chip_gen: v5e
topology: v5e:2x2
jax: 0.10.0
libtpu: 0.0.40
codegen_flags: <defaults>
</compile_context>

<pallas_src>
import functools

import jax
import jax.numpy as jnp
from jax.experimental import pallas as pl
from jax.experimental.pallas import tpu as pltpu


def _round_up(x, m):
    return ((x + m - 1) // m) * m


def ffnn_kernel(x_ref, w1_ref, b1_ref, w2_ref, b2_ref, o_ref, *, compute_dtype):
    # Preprocessing (/255, mean subtraction) already folded into w1/b1 on the host.
    x = x_ref[...].astype(compute_dtype)

    # Hidden layer: Linear -> ReLU (accumulate in fp32 on the MXU).
    h = jnp.dot(x, w1_ref[...], preferred_element_type=jnp.float32) + b1_ref[...]
    h = jnp.maximum(h, 0.0)

    # Output layer: Linear (lane-dense padded output).
    y = jnp.dot(h.astype(compute_dtype), w2_ref[...],
                preferred_element_type=jnp.float32) + b2_ref[...]
    o_ref[...] = y.astype(o_ref.dtype)


def feedforward_nn(x, mean_image, w1, b1, w2, b2, *, tb=256,
                   compute_dtype=jnp.float32):
    """Fused preprocess + single-hidden-layer MLP.

    x:          [B, D]   float32 (raw pixel values in [0, 255])
    mean_image: [1, D]   float32 (mean of the already /255-scaled data)
    w1:         [D, H]   float32
    b1:         [1, H]   float32
    w2:         [H, O]   float32
    b2:         [1, O]   float32
    returns     [B, O]   float32
    """
    B, D = x.shape
    H = w1.shape[1]
    O = w2.shape[1]

    # ---- Fold preprocessing into the first layer (host-side, fp32) ----
    # ((x/255) - mean) @ W1 + b1  ==  x @ (W1/255) + (b1 - mean @ W1)
    w1_f = (w1 / 255.0).astype(jnp.float32)
    b1_f = (b1 - mean_image @ w1).astype(jnp.float32)

    # ---- Lane-dense output: zero-pad O up to a multiple of 128 ----
    O_pad = _round_up(O, 128)
    if O_pad != O:
        w2 = jnp.pad(w2, ((0, 0), (0, O_pad - O)))
        b2 = jnp.pad(b2, ((0, 0), (0, O_pad - O)))
    b2_f = b2.astype(jnp.float32)

    # MXU input dtype (bf16 on v6e/v7x for throughput; fp32 is the safe default).
    w1_c = w1_f.astype(compute_dtype)
    w2_c = w2.astype(compute_dtype)

    # ---- Batch tile selection: as large as possible, bounded by B and VMEM ----
    itemsize = jnp.dtype(compute_dtype).itemsize
    # Resident weights/biases are still double-buffered by the pipeline.
    weight_bytes = 2 * (D * H * itemsize + H * O_pad * itemsize + (H + O_pad) * 4)
    vmem_budget = 48 * 2**20  # conservative: fits v7x's 64 MiB physical VMEM
    tb = max(8, min(tb, _round_up(B, 8)))
    tb = _round_up(tb, 8)
    while tb > 8 and weight_bytes + 2 * tb * (D + O_pad) * 4 > vmem_budget:
        tb = _round_up(max(8, tb // 2), 8)

    # ---- Pad the batch so the grid covers it (no divisibility requirement) ----
    B_pad = _round_up(B, tb)
    if B_pad != B:
        x = jnp.pad(x, ((0, B_pad - B), (0, 0)))
    grid = (B_pad // tb,)

    est_bytes = weight_bytes + 2 * tb * (D + O_pad) * 4 + 2 * 2**20
    vmem_limit = int(min(max(est_bytes, 32 * 2**20), 64 * 2**20))

    out = pl.pallas_call(
        functools.partial(ffnn_kernel, compute_dtype=compute_dtype),
        out_shape=jax.ShapeDtypeStruct((B_pad, O_pad), jnp.float32),
        grid=grid,
        in_specs=[
            pl.BlockSpec((tb, D), lambda i: (i, 0)),      # x tile over batch
            pl.BlockSpec((D, H), lambda i: (0, 0)),       # folded W1 (resident)
            pl.BlockSpec((1, H), lambda i: (0, 0)),       # folded b1
            pl.BlockSpec((H, O_pad), lambda i: (0, 0)),   # padded W2 (resident)
            pl.BlockSpec((1, O_pad), lambda i: (0, 0)),   # padded b2
        ],
        out_specs=pl.BlockSpec((tb, O_pad), lambda i: (i, 0)),
        compiler_params=pltpu.CompilerParams(
            dimension_semantics=("parallel",),
            vmem_limit_bytes=vmem_limit,
        ),
    )(x, w1_c, b1_f, w2_c, b2_f)

    # Strip batch padding and the lane-padding columns.
    return out[:B, :O]
    # TODO(synk): if D or H grow large (high-res flattened images), add a K-tiling
    # grid axis ("arbitrary") with an fp32 VMEM accumulator instead of resident W1.


def reference(x, mean_image, w1, b1, w2, b2):
    x = x / 255.0
    x = x - mean_image
    h = jnp.maximum(x @ w1 + b1, 0.0)
    return h @ w2 + b2


if __name__ == "__main__":
    key = jax.random.PRNGKey(0)
    k_x, k_mean, k_w1, k_b1, k_w2, k_b2 = jax.random.split(key, 6)

    # Small shapes consistent with a flattened-image single-hidden-layer MLP.
    B, D, H, O = 32, 256, 128, 10   # batch, in_features (16x16 image), hidden, classes

    # Deterministic "pixel" inputs in [0, 255].
    x = jax.random.uniform(k_x, (B, D), jnp.float32, 0.0, 255.0)
    # mean_image is the per-pixel mean of the (already /255-scaled) dataset.
    mean_image = jax.random.uniform(k_mean, (1, D), jnp.float32, 0.0, 1.0)

    # Deterministic nn.Linear-style uniform init: U(-1/sqrt(fan_in), 1/sqrt(fan_in)).
    lim1 = 1.0 / jnp.sqrt(jnp.float32(D))
    lim2 = 1.0 / jnp.sqrt(jnp.float32(H))
    w1 = jax.random.uniform(k_w1, (D, H), jnp.float32, -lim1, lim1)
    b1 = jax.random.uniform(k_b1, (1, H), jnp.float32, -lim1, lim1)
    w2 = jax.random.uniform(k_w2, (H, O), jnp.float32, -lim2, lim2)
    b2 = jax.random.uniform(k_b2, (1, O), jnp.float32, -lim2, lim2)

    ref = reference(x, mean_image, w1, b1, w2, b2)

    # fp32 path (default): tight numerical check.
    out = feedforward_nn(x, mean_image, w1, b1, w2, b2)
    out = jax.block_until_ready(out)
    assert out.shape == (B, O)
    assert jnp.allclose(out, ref, atol=1e-3, rtol=1e-3), "fp32 mismatch vs reference"

    # bf16 MXU-input path (v6e/v7x throughput option): loose check.
    out_bf16 = feedforward_nn(x, mean_image, w1, b1, w2, b2,
                              compute_dtype=jnp.bfloat16)
    out_bf16 = jax.block_until_ready(out_bf16)
    assert out_bf16.shape == (B, O)
    assert float(jnp.max(jnp.abs(out_bf16 - ref))) < 0.25, "bf16 mismatch vs reference"

    print("KERNEL_OK")
</pallas_src>

<mosaic_0001>
module attributes {stable_mosaic.version = 11 : i64} {
  func.func @ffnn_kernel(%arg0: i32, %arg1: memref<32x256xf32, #tpu.memory_space<vmem>>, %arg2: memref<256x128xf32, #tpu.memory_space<vmem>>, %arg3: memref<1x128xf32, #tpu.memory_space<vmem>>, %arg4: memref<128x128xf32, #tpu.memory_space<vmem>>, %arg5: memref<1x128xf32, #tpu.memory_space<vmem>>, %arg6: memref<32x128xf32, #tpu.memory_space<vmem>>) attributes {dimension_semantics = [#tpu.dimension_semantics<parallel>], iteration_bounds = array<i64: 1>, scalar_prefetch = 0 : i64, scratch_operands = 0 : i64, tpu.core_type = #tpu.core_type<tc>, window_params = [{transform_indices = @transform_0, window_bounds = array<i64: 32, 256>}, {pipeline_mode = #tpu.pipeline_mode<synchronous>, transform_indices = @transform_1, window_bounds = array<i64: 256, 128>}, {pipeline_mode = #tpu.pipeline_mode<synchronous>, transform_indices = @transform_2, window_bounds = array<i64: 1, 128>}, {pipeline_mode = #tpu.pipeline_mode<synchronous>, transform_indices = @transform_3, window_bounds = array<i64: 128, 128>}, {pipeline_mode = #tpu.pipeline_mode<synchronous>, transform_indices = @transform_4, window_bounds = array<i64: 1, 128>}, {transform_indices = @transform_5, window_bounds = array<i64: 32, 128>}]} {
    %c0 = arith.constant 0 : index
    %c0_0 = arith.constant 0 : index
    %0 = vector.load %arg1[%c0, %c0_0] : memref<32x256xf32, #tpu.memory_space<vmem>>, vector<32x256xf32>
    %c0_1 = arith.constant 0 : index
    %c0_2 = arith.constant 0 : index
    %1 = vector.load %arg2[%c0_1, %c0_2] : memref<256x128xf32, #tpu.memory_space<vmem>>, vector<256x128xf32>
    %cst = arith.constant dense<0.000000e+00> : vector<32x128xf32>
    %2 = tpu.matmul %0, %1, %cst {dimension_numbers = #tpu.dot_dimension_numbers<[1], [0], [0], [1], [0, 0, 1, 1], [], []>} : vector<32x256xf32>, vector<256x128xf32>, vector<32x128xf32> -> vector<32x128xf32>
    %c0_3 = arith.constant 0 : index
    %c0_4 = arith.constant 0 : index
    %3 = vector.load %arg3[%c0_3, %c0_4] : memref<1x128xf32, #tpu.memory_space<vmem>>, vector<1x128xf32>
    %4 = vector.broadcast %3 : vector<1x128xf32> to vector<32x128xf32>
    %5 = arith.addf %2, %4 : vector<32x128xf32>
    %cst_5 = arith.constant 0.000000e+00 : f32
    %6 = vector.broadcast %cst_5 : f32 to vector<32x128xf32>
    %7 = arith.maximumf %5, %6 : vector<32x128xf32>
    %c0_6 = arith.constant 0 : index
    %c0_7 = arith.constant 0 : index
    %8 = vector.load %arg4[%c0_6, %c0_7] : memref<128x128xf32, #tpu.memory_space<vmem>>, vector<128x128xf32>
    %cst_8 = arith.constant dense<0.000000e+00> : vector<32x128xf32>
    %9 = tpu.matmul %7, %8, %cst_8 {dimension_numbers = #tpu.dot_dimension_numbers<[1], [0], [0], [1], [0, 0, 1, 1], [], []>} : vector<32x128xf32>, vector<128x128xf32>, vector<32x128xf32> -> vector<32x128xf32>
    %c0_9 = arith.constant 0 : index
    %c0_10 = arith.constant 0 : index
    %10 = vector.load %arg5[%c0_9, %c0_10] : memref<1x128xf32, #tpu.memory_space<vmem>>, vector<1x128xf32>
    %11 = vector.broadcast %10 : vector<1x128xf32> to vector<32x128xf32>
    %12 = arith.addf %9, %11 : vector<32x128xf32>
    %c0_11 = arith.constant 0 : index
    %c0_12 = arith.constant 0 : index
    %13 = vector.load %arg6[%c0_11, %c0_12] : memref<32x128xf32, #tpu.memory_space<vmem>>, vector<32x128xf32>
    tpu.vector_store %arg6[%c0_11, %c0_12], %12 {strides = array<i32>} : memref<32x128xf32, #tpu.memory_space<vmem>>, vector<32x128xf32>,
    return
  }
  func.func @transform_0(%arg0: i32) -> (i32, i32) {
    %c0_i32 = arith.constant 0 : i32
    %c0_i32_0 = arith.constant 0 : i32
    return %arg0, %c0_i32 : i32, i32
  }
  func.func @transform_1(%arg0: i32) -> (i32, i32) {
    %c0_i32 = arith.constant 0 : i32
    %c0_i32_0 = arith.constant 0 : i32
    %c0_i32_1 = arith.constant 0 : i32
    return %c0_i32, %c0_i32_0 : i32, i32
  }
  func.func @transform_2(%arg0: i32) -> (i32, i32) {
    %c0_i32 = arith.constant 0 : i32
    %c0_i32_0 = arith.constant 0 : i32
    %c0_i32_1 = arith.constant 0 : i32
    return %c0_i32, %c0_i32_0 : i32, i32
  }
  func.func @transform_3(%arg0: i32) -> (i32, i32) {
    %c0_i32 = arith.constant 0 : i32
    %c0_i32_0 = arith.constant 0 : i32
    %c0_i32_1 = arith.constant 0 : i32
    return %c0_i32, %c0_i32_0 : i32, i32
  }
  func.func @transform_4(%arg0: i32) -> (i32, i32) {
    %c0_i32 = arith.constant 0 : i32
    %c0_i32_0 = arith.constant 0 : i32
    %c0_i32_1 = arith.constant 0 : i32
    return %c0_i32, %c0_i32_0 : i32, i32
  }
  func.func @transform_5(%arg0: i32) -> (i32, i32) {
    %c0_i32 = arith.constant 0 : i32
    %c0_i32_0 = arith.constant 0 : i32
    return %arg0, %c0_i32 : i32, i32
  }
}

</mosaic_0001>

<llo_original>
// kernel: tpu_custom_call.1
$region0: #{tpu_custom_call.1}
  #allocation0 [shape = 'u32[]', space=smem, size = 0x4, offset = 0x4, fixed_abs, tag = 'smem constant byte address 0x4 - core index']
  #allocation1 [shape = 'u32[72,128]{1,0:T(1,128)}', space=vmem, size = 0x9000, scoped, tag = 'internal scratch']
  %s0 = inlined_call_operand.hbm [shape: f32[32,256], index: 0, kind: input, shape index: {}]
  %s1 = inlined_call_operand.hbm [shape: f32[256,128], index: 1, kind: input, shape index: {}]
  %s2 = inlined_call_operand.vmem [shape: f32[1,128], index: 2, kind: input, shape index: {}]
  %s3 = inlined_call_operand.hbm [shape: f32[128,128], index: 3, kind: input, shape index: {}]
  %s4 = inlined_call_operand.vmem [shape: f32[1,128], index: 4, kind: input, shape index: {}]
  %s5 = inlined_call_operand.hbm [shape: f32[32,128], index: 5, kind: output, shape index: {}]
  %s6 = sld [smem:[#allocation0]]
  $region42: #{tpu_custom_call.1} parent=0
    _
  %s8 = ssub.s32 1, %s6
  %s9 = scalar_select 0, %s8, %s6
  $region1: #{tpu_custom_call.1} parent=0
    #allocation2 [shape = 'u8[32768]{0}', space=vmem, size = 0x8000, scoped, tag = 'input window, operand 0, single buffered']
    #allocation3 [shape = 's32[1]{0}', space=sflag, size = 0x4, scoped, tag = 'scoped memory for tpu_custom_call.1']
    #allocation4 [shape = 's32[1]{0}', space=sflag, size = 0x4, scoped, tag = 'scoped memory for tpu_custom_call.1']
    #allocation5 [shape = 'u8[131072]{0}', space=vmem, size = 0x20000, scoped, tag = 'input window, operand 1, single buffered']
    #allocation6 [shape = 's32[1]{0}', space=sflag, size = 0x4, scoped, tag = 'scoped memory for tpu_custom_call.1']
    #allocation7 [shape = 'u8[65536]{0}', space=vmem, size = 0x10000, scoped, tag = 'input window, operand 3, single buffered']
    #allocation8 [shape = 'u8[16384]{0}', space=vmem, size = 0x4000, scoped, tag = 'output window, operand 0, single buffered']
    %10 = vsyncpa [#allocation3], 0
    %11 = vsyncpa [#allocation6], 0
    %12 = vsyncpa [#allocation4], 0
    // Predicated region
    $region2: #{tpu_custom_call.1} parent=1 // pred_check
      _
    $region3: #{tpu_custom_call.1} parent=1 // pred_check_branch
      %14 = sbr.rel (0) target = $region5
    $region4: #{tpu_custom_call.1} parent=1 // pred_region
      %16 = vsyncadd [#allocation3], 0
      %s17 = sshll.u32 %s0, 4
      %s18 = int_to_ptr.hbm [resolvable:$true] %s17
      %s19 = sshll.u32 [#allocation2], 4
      %s20 = int_to_ptr.vmem [resolvable:$true] %s19
      %25 = dma.hbm_to_vmem [thread:$0]  %s18, 1024, %s20, [#allocation3], 256, 256, 16
    $region5: #{tpu_custom_call.1} parent=1 // pred_fallthru
      _
    // Predicated region
    $region6: #{tpu_custom_call.1} parent=1 // pred_check
      _
    $region7: #{tpu_custom_call.1} parent=1 // pred_check_branch
      %27 = sbr.rel (0) target = $region9
    $region8: #{tpu_custom_call.1} parent=1 // pred_region
      %29 = vsyncadd [#allocation6], 0
      %s30 = sshll.u32 %s1, 4
      %s31 = int_to_ptr.hbm [resolvable:$true] %s30
      %s32 = sshll.u32 [#allocation5], 4
      %s33 = int_to_ptr.vmem [resolvable:$true] %s32
      %38 = dma.hbm_to_vmem [thread:$0]  %s31, 4096, %s33, [#allocation6], 128, 128, 8
    $region9: #{tpu_custom_call.1} parent=1 // pred_fallthru
      _
    // Predicated region
    $region10: #{tpu_custom_call.1} parent=1 // pred_check
      _
    $region11: #{tpu_custom_call.1} parent=1 // pred_check_branch
      %40 = sbr.rel (0) target = $region13
    $region12: #{tpu_custom_call.1} parent=1 // pred_region
      _
    $region13: #{tpu_custom_call.1} parent=1 // pred_fallthru
      _
    // Predicated region
    $region14: #{tpu_custom_call.1} parent=1 // pred_check
      _
    $region15: #{tpu_custom_call.1} parent=1 // pred_check_branch
      %42 = sbr.rel (0) target = $region17
    $region16: #{tpu_custom_call.1} parent=1 // pred_region
      %44 = vsyncadd [#allocation6], 0
      %s45 = sshll.u32 %s3, 4
      %s46 = int_to_ptr.hbm [resolvable:$true] %s45
      %s47 = sshll.u32 [#allocation7], 4
      %s48 = int_to_ptr.vmem [resolvable:$true] %s47
      %53 = dma.hbm_to_vmem [thread:$0]  %s46, 2048, %s48, [#allocation6], 128, 128, 8
    $region17: #{tpu_custom_call.1} parent=1 // pred_fallthru
      _
    // Predicated region
    $region18: #{tpu_custom_call.1} parent=1 // pred_check
      _
    $region19: #{tpu_custom_call.1} parent=1 // pred_check_branch
      %55 = sbr.rel (0) target = $region21
    $region20: #{tpu_custom_call.1} parent=1 // pred_region
      _
    $region21: #{tpu_custom_call.1} parent=1 // pred_fallthru
      _
    // Predicated region
    $region22: #{tpu_custom_call.1} parent=1 // pred_check
      _
    $region23: #{tpu_custom_call.1} parent=1 // pred_check_branch
      %57 = sbr.rel (0) target = $region25
    $region24: #{tpu_custom_call.1} parent=1 // pred_region
      %59 = dma.done [#allocation3], 1024
    $region25: #{tpu_custom_call.1} parent=1 // pred_fallthru
      _
    // Predicated region
    $region26: #{tpu_custom_call.1} parent=1 // pred_check
      _
    $region27: #{tpu_custom_call.1} parent=1 // pred_check_branch
      %61 = sbr.rel (0) target = $region29
    $region28: #{tpu_custom_call.1} parent=1 // pred_region
      %63 = dma.done [#allocation6], 4096
    $region29: #{tpu_custom_call.1} parent=1 // pred_fallthru
      _
    // Predicated region
    $region30: #{tpu_custom_call.1} parent=1 // pred_check
      _
    $region31: #{tpu_custom_call.1} parent=1 // pred_check_branch
      %65 = sbr.rel (0) target = $region33
    $region32: #{tpu_custom_call.1} parent=1 // pred_region
      %67 = dma.done [#allocation6], 2048
    $region33: #{tpu_custom_call.1} parent=1 // pred_fallthru
      _
    %v68 = vld [vmem:[#allocation2] sm:$0xff]
    %v69 = vld [vmem:[#allocation2 + $0x8] sm:$0xff]
    %v70 = vld [vmem:[#allocation2 + $0x10] sm:$0xff]
    %v71 = vld [vmem:[#allocation2 + $0x18] sm:$0xff]
    %v72 = vld [vmem:[#allocation2 + $0x20] sm:$0xff]
    %v73 = vld [vmem:[#allocation2 + $0x28] sm:$0xff]
    %v74 = vld [vmem:[#allocation2 + $0x30] sm:$0xff]
    %v75 = vld [vmem:[#allocation2 + $0x38] sm:$0xff]
    %v76 = vld [vmem:[#allocation5] sm:$0xff]
    %v77 = vld [vmem:[#allocation5 + $0x8] sm:$0xff]
    %v78 = vld [vmem:[#allocation5 + $0x10] sm:$0xff]
    %v79 = vld [vmem:[#allocation5 + $0x18] sm:$0xff]
    %v80 = vld [vmem:[#allocation5 + $0x20] sm:$0xff]
    %v81 = vld [vmem:[#allocation5 + $0x28] sm:$0xff]
    %v82 = vld [vmem:[#allocation5 + $0x30] sm:$0xff]
    %v83 = vld [vmem:[#allocation5 + $0x38] sm:$0xff]
    %v84 = vld [vmem:[#allocation5 + $0x40] sm:$0xff]
    %v85 = vld [vmem:[#allocation5 + $0x48] sm:$0xff]
    %v86 = vld [vmem:[#allocation5 + $0x50] sm:$0xff]
    %v87 = vld [vmem:[#allocation5 + $0x58] sm:$0xff]
    %v88 = vld [vmem:[#allocation5 + $0x60] sm:$0xff]
    %v89 = vld [vmem:[#allocation5 + $0x68] sm:$0xff]
    %v90 = vld [vmem:[#allocation5 + $0x70] sm:$0xff]
    %v91 = vld [vmem:[#allocation5 + $0x78] sm:$0xff]
    %v92 = vld [vmem:[#allocation5 + $0x80] sm:$0xff]
    %v93 = vld [vmem:[#allocation5 + $0x88] sm:$0xff]
    %v94 = vld [vmem:[#allocation5 + $0x90] sm:$0xff]
    %v95 = vld [vmem:[#allocation5 + $0x98] sm:$0xff]
    %v96 = vld [vmem:[#allocation5 + $0xa0] sm:$0xff]
    %v97 = vld [vmem:[#allocation5 + $0xa8] sm:$0xff]
    %v98 = vld [vmem:[#allocation5 + $0xb0] sm:$0xff]
    %v99 = vld [vmem:[#allocation5 + $0xb8] sm:$0xff]
    %v100 = vld [vmem:[#allocation5 + $0xc0] sm:$0xff]
    %v101 = vld [vmem:[#allocation5 + $0xc8] sm:$0xff]
    %v102 = vld [vmem:[#allocation5 + $0xd0] sm:$0xff]
    %v103 = vld [vmem:[#allocation5 + $0xd8] sm:$0xff]
    %v104 = vld [vmem:[#allocation5 + $0xe0] sm:$0xff]
    %v105 = vld [vmem:[#allocation5 + $0xe8] sm:$0xff]
    %v106 = vld [vmem:[#allocation5 + $0xf0] sm:$0xff]
    %v107 = vld [vmem:[#allocation5 + $0xf8] sm:$0xff]
    %v108 = vld [vmem:[%s2] sm:$0x1]
    %v110 = vperm.slane %v108, 0
    %112 = vmatpush.msra.mxu0 %v91
    %113 = vmatpush.msra.mxu0 %v90
    %114 = vmatpush.msra.mxu0 %v89
    %115 = vmatpush.msra.mxu0 %v88
    %116 = vmatpush.msra.mxu0 %v87
    %117 = vmatpush.msra.mxu0 %v86
    %118 = vmatpush.msra.mxu0 %v85
    %119 = vmatpush.msra.mxu0 %v84
    %120 = vmatpush.msra.mxu0 %v83
    %121 = vmatpush.msra.mxu0 %v82
    %122 = vmatpush.msra.mxu0 %v81
    %123 = vmatpush.msra.mxu0 %v80
    %124 = vmatpush.msra.mxu0 %v79
    %125 = vmatpush.msra.mxu0 %v78
    %126 = vmatpush.msra.mxu0 %v77
    %127 = vmatpush.msra.mxu0 %v76
    %128 = vmatmul.f32.gmra.mxu0 %v68
    %v129 = vpop.f32.mrf.mxu0
    %v130 = vadd.f32 %v110, %v129
    %131 = vmatmul.f32.gmra.mxu0 %v70
    %v132 = vpop.f32.mrf.mxu0
    %v133 = vadd.f32 %v110, %v132
    %134 = vmatmul.f32.gmra.mxu0 %v72
    %v135 = vpop.f32.mrf.mxu0
    %v136 = vadd.f32 %v110, %v135
    %137 = vmatmul.f32.gmra.mxu0 %v74
    %v138 = vpop.f32.mrf.mxu0
    %v139 = vadd.f32 %v110, %v138
    %140 = vdwg.mxu0
    %141 = vmatpush.msra.mxu0 %v107
    %142 = vmatpush.msra.mxu0 %v106
    %143 = vmatpush.msra.mxu0 %v105
    %144 = vmatpush.msra.mxu0 %v104
    %145 = vmatpush.msra.mxu0 %v103
    %146 = vmatpush.msra.mxu0 %v102
    %147 = vmatpush.msra.mxu0 %v101
    %148 = vmatpush.msra.mxu0 %v100
    %149 = vmatpush.msra.mxu0 %v99
    %150 = vmatpush.msra.mxu0 %v98
    %151 = vmatpush.msra.mxu0 %v97
    %152 = vmatpush.msra.mxu0 %v96
    %153 = vmatpush.msra.mxu0 %v95
    %154 = vmatpush.msra.mxu0 %v94
    %155 = vmatpush.msra.mxu0 %v93
    %156 = vmatpush.msra.mxu0 %v92
    %157 = vmatmul.f32.gmra.mxu0 %v69
    %v158 = vpop.f32.mrf.mxu0
    %v159 = vadd.f32 %v130, %v158
    %160 = vmatmul.f32.gmra.mxu0 %v71
    %v161 = vpop.f32.mrf.mxu0
    %v162 = vadd.f32 %v133, %v161
    %163 = vmatmul.f32.gmra.mxu0 %v73
    %v164 = vpop.f32.mrf.mxu0
    %v165 = vadd.f32 %v136, %v164
    %166 = vmatmul.f32.gmra.mxu0 %v75
    %v167 = vpop.f32.mrf.mxu0
    %v168 = vadd.f32 %v139, %v167
    %169 = vdwg.mxu0
    %v170 = vmax.f32 %v159, 0.0
    %v171 = vmax.f32 %v162, 0.0
    %v172 = vmax.f32 %v165, 0.0
    %v173 = vmax.f32 %v168, 0.0
    %v174 = vld [vmem:[#allocation7] sm:$0xff]
    %v175 = vld [vmem:[#allocation7 + $0x8] sm:$0xff]
    %v176 = vld [vmem:[#allocation7 + $0x10] sm:$0xff]
    %v177 = vld [vmem:[#allocation7 + $0x18] sm:$0xff]
    %v178 = vld [vmem:[#allocation7 + $0x20] sm:$0xff]
    %v179 = vld [vmem:[#allocation7 + $0x28] sm:$0xff]
    %v180 = vld [vmem:[#allocation7 + $0x30] sm:$0xff]
    %v181 = vld [vmem:[#allocation7 + $0x38] sm:$0xff]
    %v182 = vld [vmem:[#allocation7 + $0x40] sm:$0xff]
    %v183 = vld [vmem:[#allocation7 + $0x48] sm:$0xff]
    %v184 = vld [vmem:[#allocation7 + $0x50] sm:$0xff]
    %v185 = vld [vmem:[#allocation7 + $0x58] sm:$0xff]
    %v186 = vld [vmem:[#allocation7 + $0x60] sm:$0xff]
    %v187 = vld [vmem:[#allocation7 + $0x68] sm:$0xff]
    %v188 = vld [vmem:[#allocation7 + $0x70] sm:$0xff]
    %v189 = vld [vmem:[#allocation7 + $0x78] sm:$0xff]
    %v190 = vld [vmem:[%s4] sm:$0x1]
    %v192 = vperm.slane %v190, 0
    %194 = vmatpush.msra.mxu0 %v189
    %195 = vmatpush.msra.mxu0 %v188
    %196 = vmatpush.msra.mxu0 %v187
    %197 = vmatpush.msra.mxu0 %v186
    %198 = vmatpush.msra.mxu0 %v185
    %199 = vmatpush.msra.mxu0 %v184
    %200 = vmatpush.msra.mxu0 %v183
    %201 = vmatpush.msra.mxu0 %v182
    %202 = vmatpush.msra.mxu0 %v181
    %203 = vmatpush.msra.mxu0 %v180
    %204 = vmatpush.msra.mxu0 %v179
    %205 = vmatpush.msra.mxu0 %v178
    %206 = vmatpush.msra.mxu0 %v177
    %207 = vmatpush.msra.mxu0 %v176
    %208 = vmatpush.msra.mxu0 %v175
    %209 = vmatpush.msra.mxu0 %v174
    %210 = vmatmul.f32.gmra.mxu0 %v170
    %v211 = vpop.f32.mrf.mxu0
    %v212 = vadd.f32 %v192, %v211
    %213 = vmatmul.f32.gmra.mxu0 %v171
    %v214 = vpop.f32.mrf.mxu0
    %v215 = vadd.f32 %v192, %v214
    %216 = vmatmul.f32.gmra.mxu0 %v172
    %v217 = vpop.f32.mrf.mxu0
    %v218 = vadd.f32 %v192, %v217
    %219 = vmatmul.f32.gmra.mxu0 %v173
    %v220 = vpop.f32.mrf.mxu0
    %v221 = vadd.f32 %v192, %v220
    %222 = vdwg.mxu0
    %223 = vst [vmem:[#allocation8] sm:$0xff] %v212
    %224 = vst [vmem:[#allocation8 + $0x8] sm:$0xff] %v215
    %225 = vst [vmem:[#allocation8 + $0x10] sm:$0xff] %v218
    %226 = vst [vmem:[#allocation8 + $0x18] sm:$0xff] %v221
    // Predicated region
    $region34: #{tpu_custom_call.1} parent=1 // pred_check
      _
    $region35: #{tpu_custom_call.1} parent=1 // pred_check_branch
      %228 = sbr.rel (0) target = $region37
    $region36: #{tpu_custom_call.1} parent=1 // pred_region
      %230 = vsyncadd [#allocation4], 0
      %s231 = sshll.u32 [#allocation8], 4
      %s232 = int_to_ptr.vmem [resolvable:$true] %s231
      %s233 = sshll.u32 %s5, 4
      %s234 = int_to_ptr.hbm [resolvable:$true] %s233
      %239 = dma.vmem_to_hbm [thread:$0]  %s232, 512, %s234, [#allocation4], 128, 128, 8
    $region37: #{tpu_custom_call.1} parent=1 // pred_fallthru
      _
    // Predicated region
    $region38: #{tpu_custom_call.1} parent=1 // pred_check
      _
    $region39: #{tpu_custom_call.1} parent=1 // pred_check_branch
      %241 = sbr.rel (0) target = $region41
    $region40: #{tpu_custom_call.1} parent=1 // pred_region
      %243 = dma.done [#allocation4], 512
    $region41: #{tpu_custom_call.1} parent=1 // pred_fallthru
      _
    %244 = vsyncpa [#allocation3], 1
    %245 = vsyncpa [#allocation6], 1
    %246 = vsyncpa [#allocation4], 1

</llo_original>
